<compile_context>
chip_gen: v6e
topology: v6e:2x2x1
jax: 0.10.0
libtpu: 0.0.40
codegen_flags: <defaults>
</compile_context>

<pallas_src>
import jax
import jax.numpy as jnp
import numpy as np
from jax.experimental import pallas as pl
from jax.experimental.pallas import tpu as pltpu

# ---- configuration (small synthetic shapes) ----
B, C, H, W = 16, 1, 16, 16    # batch, channels, spatial
D = C * H * W                 # 256  (flattened image dim)
N_CAPS, CAP_DIM = 8, 16
Z = N_CAPS * CAP_DIM          # 128  (latent dim)
MU_SPAN = 3                   # grouper window size (within a capsule, circular)
EPS_GRP = 1e-6
TB = min(B, 128)              # batch tile: as large as B allows (>=128 target); B=16 -> grid=(1,)

assert B % TB == 0
assert CAP_DIM & (CAP_DIM - 1) == 0, "grouper mask uses & (CAP_DIM-1); CAP_DIM must be a power of 2"


def tvae_kernel(x_ref, eps_z_ref, eps_u_ref, wenc_ref, benc_ref, wdec_ref, bdec_ref,
                z_out, u_out, s_out, klz_out, klu_out, probs_out, nll_out):
    x = x_ref[...]                                  # (TB, D) f32 — kept f32 for the BCE target
    x_bf = x.astype(jnp.bfloat16)                   # bf16 only for the MXU

    # ------------- fused z + u encoder: one (D, 4Z) matmul -------------
    h = jnp.dot(x_bf, wenc_ref[...], preferred_element_type=jnp.float32) + benc_ref[...]
    mu_z, logvar_z = h[:, 0 * Z:1 * Z], h[:, 1 * Z:2 * Z]
    mu_u, logvar_u = h[:, 2 * Z:3 * Z], h[:, 3 * Z:4 * Z]

    # reparameterized samples; std*std reused for exp(logvar) in the KL (saves 2 EUP exps)
    std_z = jnp.exp(0.5 * logvar_z)
    std_u = jnp.exp(0.5 * logvar_u)
    z = mu_z + eps_z_ref[...] * std_z
    u = mu_u + eps_u_ref[...] * std_u
    kl_z = 0.5 * (std_z * std_z + mu_z * mu_z - 1.0 - logvar_z)
    kl_u = 0.5 * (std_u * std_u + mu_u * mu_u - 1.0 - logvar_u)

    # ---- grouper: capsule-local circular window sum of u^2 via XLU rolls ----
    # v[:, c*CAP_DIM + m] = sum_{k<MU_SPAN} u^2[:, c*CAP_DIM + (m+k) % CAP_DIM]
    usq = u * u
    pos = jax.lax.broadcasted_iota(jnp.int32, (TB, Z), 1) & (CAP_DIM - 1)  # lane pos within capsule
    wrap_masks = [pos >= (CAP_DIM - k) for k in range(1, MU_SPAN)]         # hoisted out of the loop
    v = usq
    for k in range(1, MU_SPAN):
        fwd = pltpu.roll(usq, shift=Z - k, axis=1)         # out[i] = usq[(i+k) % Z]
        wrap = pltpu.roll(usq, shift=CAP_DIM - k, axis=1)  # capsule-local wraparound source
        v = v + jnp.where(wrap_masks[k - 1], wrap, fwd)
    s = z * jax.lax.rsqrt(v + EPS_GRP)

    # ------------------------ Bernoulli decoder ------------------------
    logits = jnp.dot(s.astype(jnp.bfloat16), wdec_ref[...],
                     preferred_element_type=jnp.float32) + bdec_ref[...]
    e = jnp.exp(-jnp.abs(logits))                   # single EUP stream shared below
    inv = pl.reciprocal(1.0 + e, approx=False)      # exact: probs_x is a user-visible output
    probs = jnp.where(logits >= 0, inv, e * inv)    # stable exact-form sigmoid
    # stable softplus(logits) - x*logits == -Bernoulli(logits).log_prob(x)
    nll = jnp.maximum(logits, 0.0) + jnp.log1p(e) - x * logits

    # ---------- lane-dense stores (every output a multiple of 128 lanes) ----------
    z_out[...] = z
    u_out[...] = u
    s_out[...] = s
    klz_out[...] = kl_z
    klu_out[...] = kl_u
    probs_out[...] = probs
    nll_out[...] = nll


def tvae_forward(x_nchw, eps_z, eps_u, params):
    """x_nchw: (B, C, H, W) float32 in [0, 1]. Returns the 7-tuple of the torch forward."""
    b = x_nchw.shape[0]
    x_flat = x_nchw.reshape(b, D)
    w_enc, b_enc, w_dec, b_dec = params
    w_enc_bf = w_enc.astype(jnp.bfloat16)           # bf16 weights: half DMA/VMEM, full-rate MXU
    w_dec_bf = w_dec.astype(jnp.bfloat16)

    bat = lambda shp: pl.BlockSpec(shp, lambda i: (i, 0))   # tiled over batch
    fix = lambda shp: pl.BlockSpec(shp, lambda i: (0, 0))   # weights: same block every step

    grid = (b // TB,)                                        # = (1,) at B=16: single step, one TC
    in_specs = [
        bat((TB, D)),            # x (f32)
        bat((TB, Z)),            # eps_z
        bat((TB, Z)),            # eps_u
        fix((D, 4 * Z)),         # fused encoder weight (bf16)
        fix((1, 4 * Z)),         # fused encoder bias (f32)
        fix((Z, D)),             # decoder weight (bf16)
        fix((1, D)),             # decoder bias (f32)
    ]
    out_specs = [
        bat((TB, Z)),            # z
        bat((TB, Z)),            # u
        bat((TB, Z)),            # s
        bat((TB, Z)),            # kl_z
        bat((TB, Z)),            # kl_u
        bat((TB, D)),            # probs_x (flat)
        bat((TB, D)),            # neg_logpx_z (flat)
    ]
    out_shape = [
        jax.ShapeDtypeStruct((b, Z), jnp.float32),
        jax.ShapeDtypeStruct((b, Z), jnp.float32),
        jax.ShapeDtypeStruct((b, Z), jnp.float32),
        jax.ShapeDtypeStruct((b, Z), jnp.float32),
        jax.ShapeDtypeStruct((b, Z), jnp.float32),
        jax.ShapeDtypeStruct((b, D), jnp.float32),
        jax.ShapeDtypeStruct((b, D), jnp.float32),
    ]

    z, u, s, kl_z, kl_u, probs_flat, nll_flat = pl.pallas_call(
        tvae_kernel,
        out_shape=out_shape,
        grid_spec=pltpu.PrefetchScalarGridSpec(
            num_scalar_prefetch=0,
            grid=grid,
            in_specs=in_specs,
            out_specs=out_specs,
        ),
        compiler_params=pltpu.CompilerParams(
            # Tiny, overhead-bound workload: do NOT shard across v7x's two TCs.
            dimension_semantics=("arbitrary",),
            # Explicit headroom so the same structure stays safe on v7x's 64 MiB VMEM
            # if D/Z/TB are scaled up (usage today is ~1 MiB).
            vmem_limit_bytes=32 * 1024 * 1024,
        ),
    )(x_flat, eps_z, eps_u, w_enc_bf, b_enc, w_dec_bf, b_dec)

    probs_x = probs_flat.reshape(b, C, H, W)
    neg_logpx_z = nll_flat.reshape(b, C, H, W)
    return z, u, s, probs_x, kl_z, kl_u, neg_logpx_z


def tvae_reference(x_nchw, eps_z, eps_u, params):
    """Pure-JAX reference (same bf16 matmul casts) for correctness checking."""
    b = x_nchw.shape[0]
    x = x_nchw.reshape(b, D)
    w_enc, b_enc, w_dec, b_dec = params
    h = jnp.dot(x.astype(jnp.bfloat16), w_enc.astype(jnp.bfloat16),
                preferred_element_type=jnp.float32) + b_enc
    mu_z, logvar_z = h[:, :Z], h[:, Z:2 * Z]
    mu_u, logvar_u = h[:, 2 * Z:3 * Z], h[:, 3 * Z:]
    std_z = jnp.exp(0.5 * logvar_z)
    std_u = jnp.exp(0.5 * logvar_u)
    z = mu_z + eps_z * std_z
    u = mu_u + eps_u * std_u
    kl_z = 0.5 * (jnp.exp(logvar_z) + mu_z * mu_z - 1.0 - logvar_z)
    kl_u = 0.5 * (jnp.exp(logvar_u) + mu_u * mu_u - 1.0 - logvar_u)
    usq = (u * u).reshape(b, N_CAPS, CAP_DIM)
    v = sum(jnp.roll(usq, -k, axis=2) for k in range(MU_SPAN)).reshape(b, Z)
    s = z * jax.lax.rsqrt(v + EPS_GRP)
    logits = jnp.dot(s.astype(jnp.bfloat16), w_dec.astype(jnp.bfloat16),
                     preferred_element_type=jnp.float32) + b_dec
    probs = jax.nn.sigmoid(logits)
    nll = jnp.maximum(logits, 0.0) + jnp.log1p(jnp.exp(-jnp.abs(logits))) - x * logits
    return (z, u, s, probs.reshape(x_nchw.shape), kl_z, kl_u, nll.reshape(x_nchw.shape))


def make_params(key):
    ke, kd = jax.random.split(key, 2)
    w_enc = jax.random.normal(ke, (D, 4 * Z), jnp.float32) / np.sqrt(D)   # [mu_z|logvar_z|mu_u|logvar_u]
    b_enc = jnp.zeros((1, 4 * Z), jnp.float32)
    w_dec = jax.random.normal(kd, (Z, D), jnp.float32) / np.sqrt(Z)
    b_dec = jnp.zeros((1, D), jnp.float32)
    return w_enc, b_enc, w_dec, b_dec


if __name__ == "__main__":
    key = jax.random.PRNGKey(0)
    k_x, k_ez, k_eu, k_p = jax.random.split(key, 4)

    x = jax.random.uniform(k_x, (B, C, H, W), jnp.float32)      # Bernoulli targets in [0,1]
    eps_z = jax.random.normal(k_ez, (B, Z), jnp.float32)        # reparameterization noise
    eps_u = jax.random.normal(k_eu, (B, Z), jnp.float32)
    params = make_params(k_p)

    outs = jax.block_until_ready(tvae_forward(x, eps_z, eps_u, params))
    refs = jax.block_until_ready(tvae_reference(x, eps_z, eps_u, params))

    names = ("z", "u", "s", "probs_x", "kl_z", "kl_u", "neg_logpx_z")
    for name, got, want in zip(names, outs, refs):
        assert got.shape == want.shape, name
        np.testing.assert_allclose(np.asarray(got), np.asarray(want),
                                   rtol=2e-2, atol=2e-2, err_msg=name)
    print("KERNEL_OK")
</pallas_src>

<mosaic_0001>
module attributes {stable_mosaic.version = 11 : i64} {
  func.func @tvae_kernel(%arg0: i32, %arg1: memref<16x256xf32, #tpu.memory_space<vmem>>, %arg2: memref<16x128xf32, #tpu.memory_space<vmem>>, %arg3: memref<16x128xf32, #tpu.memory_space<vmem>>, %arg4: memref<256x512xbf16, #tpu.memory_space<vmem>>, %arg5: memref<1x512xf32, #tpu.memory_space<vmem>>, %arg6: memref<128x256xbf16, #tpu.memory_space<vmem>>, %arg7: memref<1x256xf32, #tpu.memory_space<vmem>>, %arg8: memref<16x128xf32, #tpu.memory_space<vmem>>, %arg9: memref<16x128xf32, #tpu.memory_space<vmem>>, %arg10: memref<16x128xf32, #tpu.memory_space<vmem>>, %arg11: memref<16x128xf32, #tpu.memory_space<vmem>>, %arg12: memref<16x128xf32, #tpu.memory_space<vmem>>, %arg13: memref<16x256xf32, #tpu.memory_space<vmem>>, %arg14: memref<16x256xf32, #tpu.memory_space<vmem>>) attributes {dimension_semantics = [#tpu.dimension_semantics<arbitrary>], iteration_bounds = array<i64: 1>, scalar_prefetch = 0 : i64, scratch_operands = 0 : i64, tpu.core_type = #tpu.core_type<tc>, window_params = [{transform_indices = @transform_0, window_bounds = array<i64: 16, 256>}, {transform_indices = @transform_1, window_bounds = array<i64: 16, 128>}, {transform_indices = @transform_2, window_bounds = array<i64: 16, 128>}, {pipeline_mode = #tpu.pipeline_mode<synchronous>, transform_indices = @transform_3, window_bounds = array<i64: 256, 512>}, {pipeline_mode = #tpu.pipeline_mode<synchronous>, transform_indices = @transform_4, window_bounds = array<i64: 1, 512>}, {pipeline_mode = #tpu.pipeline_mode<synchronous>, transform_indices = @transform_5, window_bounds = array<i64: 128, 256>}, {pipeline_mode = #tpu.pipeline_mode<synchronous>, transform_indices = @transform_6, window_bounds = array<i64: 1, 256>}, {transform_indices = @transform_7, window_bounds = array<i64: 16, 128>}, {transform_indices = @transform_8, window_bounds = array<i64: 16, 128>}, {transform_indices = @transform_9, window_bounds = array<i64: 16, 128>}, {transform_indices = @transform_10, window_bounds = array<i64: 16, 128>}, {transform_indices = @transform_11, window_bounds = array<i64: 16, 128>}, {transform_indices = @transform_12, window_bounds = array<i64: 16, 256>}, {transform_indices = @transform_13, window_bounds = array<i64: 16, 256>}]} {
    %c0 = arith.constant 0 : index
    %c0_0 = arith.constant 0 : index
    %0 = vector.load %arg1[%c0, %c0_0] : memref<16x256xf32, #tpu.memory_space<vmem>>, vector<16x256xf32>
    %1 = arith.truncf %0 : vector<16x256xf32> to vector<16x256xbf16>
    %c0_1 = arith.constant 0 : index
    %c0_2 = arith.constant 0 : index
    %2 = vector.load %arg4[%c0_1, %c0_2] : memref<256x512xbf16, #tpu.memory_space<vmem>>, vector<256x512xbf16>
    %cst = arith.constant dense<0.000000e+00> : vector<16x512xf32>
    %3 = tpu.matmul %1, %2, %cst {dimension_numbers = #tpu.dot_dimension_numbers<[1], [0], [0], [1], [0, 0, 1, 1], [], []>} : vector<16x256xbf16>, vector<256x512xbf16>, vector<16x512xf32> -> vector<16x512xf32>
    %c0_3 = arith.constant 0 : index
    %c0_4 = arith.constant 0 : index
    %4 = vector.load %arg5[%c0_3, %c0_4] : memref<1x512xf32, #tpu.memory_space<vmem>>, vector<1x512xf32>
    %5 = vector.broadcast %4 : vector<1x512xf32> to vector<16x512xf32>
    %6 = arith.addf %3, %5 : vector<16x512xf32>
    %7 = vector.extract_strided_slice %6 {offsets = [0, 0], sizes = [16, 128], strides = [1, 1]} : vector<16x512xf32> to vector<16x128xf32>
    %8 = vector.extract_strided_slice %6 {offsets = [0, 128], sizes = [16, 128], strides = [1, 1]} : vector<16x512xf32> to vector<16x128xf32>
    %9 = vector.extract_strided_slice %6 {offsets = [0, 256], sizes = [16, 128], strides = [1, 1]} : vector<16x512xf32> to vector<16x128xf32>
    %10 = vector.extract_strided_slice %6 {offsets = [0, 384], sizes = [16, 128], strides = [1, 1]} : vector<16x512xf32> to vector<16x128xf32>
    %cst_5 = arith.constant 5.000000e-01 : f32
    %11 = vector.broadcast %cst_5 : f32 to vector<16x128xf32>
    %12 = arith.mulf %11, %8 : vector<16x128xf32>
    %13 = math.exp %12 : vector<16x128xf32>
    %cst_6 = arith.constant 5.000000e-01 : f32
    %14 = vector.broadcast %cst_6 : f32 to vector<16x128xf32>
    %15 = arith.mulf %14, %10 : vector<16x128xf32>
    %16 = math.exp %15 : vector<16x128xf32>
    %c0_7 = arith.constant 0 : index
    %c0_8 = arith.constant 0 : index
    %17 = vector.load %arg2[%c0_7, %c0_8] : memref<16x128xf32, #tpu.memory_space<vmem>>, vector<16x128xf32>
    %18 = arith.mulf %17, %13 : vector<16x128xf32>
    %19 = arith.addf %7, %18 : vector<16x128xf32>
    %c0_9 = arith.constant 0 : index
    %c0_10 = arith.constant 0 : index
    %20 = vector.load %arg3[%c0_9, %c0_10] : memref<16x128xf32, #tpu.memory_space<vmem>>, vector<16x128xf32>
    %21 = arith.mulf %20, %16 : vector<16x128xf32>
    %22 = arith.addf %9, %21 : vector<16x128xf32>
    %23 = arith.mulf %13, %13 : vector<16x128xf32>
    %24 = arith.mulf %7, %7 : vector<16x128xf32>
    %25 = arith.addf %23, %24 : vector<16x128xf32>
    %cst_11 = arith.constant 1.000000e+00 : f32
    %26 = vector.broadcast %cst_11 : f32 to vector<16x128xf32>
    %27 = arith.subf %25, %26 : vector<16x128xf32>
    %28 = arith.subf %27, %8 : vector<16x128xf32>
    %cst_12 = arith.constant 5.000000e-01 : f32
    %29 = vector.broadcast %cst_12 : f32 to vector<16x128xf32>
    %30 = arith.mulf %29, %28 : vector<16x128xf32>
    %31 = arith.mulf %16, %16 : vector<16x128xf32>
    %32 = arith.mulf %9, %9 : vector<16x128xf32>
    %33 = arith.addf %31, %32 : vector<16x128xf32>
    %cst_13 = arith.constant 1.000000e+00 : f32
    %34 = vector.broadcast %cst_13 : f32 to vector<16x128xf32>
    %35 = arith.subf %33, %34 : vector<16x128xf32>
    %36 = arith.subf %35, %10 : vector<16x128xf32>
    %cst_14 = arith.constant 5.000000e-01 : f32
    %37 = vector.broadcast %cst_14 : f32 to vector<16x128xf32>
    %38 = arith.mulf %37, %36 : vector<16x128xf32>
    %39 = arith.mulf %22, %22 : vector<16x128xf32>
    %40 = tpu.iota {dimensions = array<i32: 1>} : vector<16x128xi32>
    %c15_i32 = arith.constant 15 : i32
    %41 = vector.broadcast %c15_i32 : i32 to vector<16x128xi32>
    %42 = arith.andi %40, %41 : vector<16x128xi32>
    %c15_i32_15 = arith.constant 15 : i32
    %43 = vector.broadcast %c15_i32_15 : i32 to vector<16x128xi32>
    %44 = arith.cmpi sge, %42, %43 : vector<16x128xi32>
    %c14_i32 = arith.constant 14 : i32
    %45 = vector.broadcast %c14_i32 : i32 to vector<16x128xi32>
    %46 = arith.cmpi sge, %42, %45 : vector<16x128xi32>
    %c127_i32 = arith.constant 127 : i32
    %47 = tpu.dynamic_rotate %39 by %c127_i32 dim 1 : vector<16x128xf32>, i32 -> vector<16x128xf32>
    %c15_i32_16 = arith.constant 15 : i32
    %48 = tpu.dynamic_rotate %39 by %c15_i32_16 dim 1 : vector<16x128xf32>, i32 -> vector<16x128xf32>
    %49 = arith.select %44, %48, %47 : vector<16x128xi1>, vector<16x128xf32>
    %50 = arith.addf %39, %49 : vector<16x128xf32>
    %c126_i32 = arith.constant 126 : i32
    %51 = tpu.dynamic_rotate %39 by %c126_i32 dim 1 : vector<16x128xf32>, i32 -> vector<16x128xf32>
    %c14_i32_17 = arith.constant 14 : i32
    %52 = tpu.dynamic_rotate %39 by %c14_i32_17 dim 1 : vector<16x128xf32>, i32 -> vector<16x128xf32>
    %53 = arith.select %46, %52, %51 : vector<16x128xi1>, vector<16x128xf32>
    %54 = arith.addf %50, %53 : vector<16x128xf32>
    %cst_18 = arith.constant 9.99999997E-7 : f32
    %55 = vector.broadcast %cst_18 : f32 to vector<16x128xf32>
    %56 = arith.addf %54, %55 : vector<16x128xf32>
    %57 = math.rsqrt %56 : vector<16x128xf32>
    %58 = arith.mulf %19, %57 : vector<16x128xf32>
    %59 = arith.truncf %58 : vector<16x128xf32> to vector<16x128xbf16>
    %c0_19 = arith.constant 0 : index
    %c0_20 = arith.constant 0 : index
    %60 = vector.load %arg6[%c0_19, %c0_20] : memref<128x256xbf16, #tpu.memory_space<vmem>>, vector<128x256xbf16>
    %cst_21 = arith.constant dense<0.000000e+00> : vector<16x256xf32>
    %61 = tpu.matmul %59, %60, %cst_21 {dimension_numbers = #tpu.dot_dimension_numbers<[1], [0], [0], [1], [0, 0, 1, 1], [], []>} : vector<16x128xbf16>, vector<128x256xbf16>, vector<16x256xf32> -> vector<16x256xf32>
    %c0_22 = arith.constant 0 : index
    %c0_23 = arith.constant 0 : index
    %62 = vector.load %arg7[%c0_22, %c0_23] : memref<1x256xf32, #tpu.memory_space<vmem>>, vector<1x256xf32>
    %63 = vector.broadcast %62 : vector<1x256xf32> to vector<16x256xf32>
    %64 = arith.addf %61, %63 : vector<16x256xf32>
    %65 = math.absf %64 : vector<16x256xf32>
    %cst_24 = arith.constant 0.000000e+00 : f32
    %66 = vector.broadcast %cst_24 : f32 to vector<16x256xf32>
    %67 = arith.subf %66, %65 : vector<16x256xf32>
    %68 = math.exp %67 : vector<16x256xf32>
    %cst_25 = arith.constant 1.000000e+00 : f32
    %69 = vector.broadcast %cst_25 : f32 to vector<16x256xf32>
    %70 = arith.addf %69, %68 : vector<16x256xf32>
    %71 = tpu.reciprocal %70 : vector<16x256xf32> -> vector<16x256xf32>
    %cst_26 = arith.constant 0.000000e+00 : f32
    %72 = vector.broadcast %cst_26 : f32 to vector<16x256xf32>
    %73 = arith.cmpf oge, %64, %72 : vector<16x256xf32>
    %74 = arith.mulf %68, %71 : vector<16x256xf32>
    %75 = arith.select %73, %71, %74 : vector<16x256xi1>, vector<16x256xf32>
    %cst_27 = arith.constant 0.000000e+00 : f32
    %76 = vector.broadcast %cst_27 : f32 to vector<16x256xf32>
    %77 = arith.maximumf %64, %76 : vector<16x256xf32>
    %78 = math.log1p %68 : vector<16x256xf32>
    %79 = arith.addf %77, %78 : vector<16x256xf32>
    %80 = arith.mulf %0, %64 : vector<16x256xf32>
    %81 = arith.subf %79, %80 : vector<16x256xf32>
    %c0_28 = arith.constant 0 : index
    %c0_29 = arith.constant 0 : index
    %82 = vector.load %arg8[%c0_28, %c0_29] : memref<16x128xf32, #tpu.memory_space<vmem>>, vector<16x128xf32>
    tpu.vector_store %arg8[%c0_28, %c0_29], %19 {strides = array<i32>} : memref<16x128xf32, #tpu.memory_space<vmem>>, vector<16x128xf32>,
    %c0_30 = arith.constant 0 : index
    %c0_31 = arith.constant 0 : index
    %83 = vector.load %arg9[%c0_30, %c0_31] : memref<16x128xf32, #tpu.memory_space<vmem>>, vector<16x128xf32>
    tpu.vector_store %arg9[%c0_30, %c0_31], %22 {strides = array<i32>} : memref<16x128xf32, #tpu.memory_space<vmem>>, vector<16x128xf32>,
    %c0_32 = arith.constant 0 : index
    %c0_33 = arith.constant 0 : index
    %84 = vector.load %arg10[%c0_32, %c0_33] : memref<16x128xf32, #tpu.memory_space<vmem>>, vector<16x128xf32>
    tpu.vector_store %arg10[%c0_32, %c0_33], %58 {strides = array<i32>} : memref<16x128xf32, #tpu.memory_space<vmem>>, vector<16x128xf32>,
    %c0_34 = arith.constant 0 : index
    %c0_35 = arith.constant 0 : index
    %85 = vector.load %arg11[%c0_34, %c0_35] : memref<16x128xf32, #tpu.memory_space<vmem>>, vector<16x128xf32>
    tpu.vector_store %arg11[%c0_34, %c0_35], %30 {strides = array<i32>} : memref<16x128xf32, #tpu.memory_space<vmem>>, vector<16x128xf32>,
    %c0_36 = arith.constant 0 : index
    %c0_37 = arith.constant 0 : index
    %86 = vector.load %arg12[%c0_36, %c0_37] : memref<16x128xf32, #tpu.memory_space<vmem>>, vector<16x128xf32>
    tpu.vector_store %arg12[%c0_36, %c0_37], %38 {strides = array<i32>} : memref<16x128xf32, #tpu.memory_space<vmem>>, vector<16x128xf32>,
    %c0_38 = arith.constant 0 : index
    %c0_39 = arith.constant 0 : index
    %87 = vector.load %arg13[%c0_38, %c0_39] : memref<16x256xf32, #tpu.memory_space<vmem>>, vector<16x256xf32>
    tpu.vector_store %arg13[%c0_38, %c0_39], %75 {strides = array<i32>} : memref<16x256xf32, #tpu.memory_space<vmem>>, vector<16x256xf32>,
    %c0_40 = arith.constant 0 : index
    %c0_41 = arith.constant 0 : index
    %88 = vector.load %arg14[%c0_40, %c0_41] : memref<16x256xf32, #tpu.memory_space<vmem>>, vector<16x256xf32>
    tpu.vector_store %arg14[%c0_40, %c0_41], %81 {strides = array<i32>} : memref<16x256xf32, #tpu.memory_space<vmem>>, vector<16x256xf32>,
    return
  }
  func.func @transform_0(%arg0: i32) -> (i32, i32) {
    %c0_i32 = arith.constant 0 : i32
    %c0_i32_0 = arith.constant 0 : i32
    return %arg0, %c0_i32 : i32, i32
  }
  func.func @transform_1(%arg0: i32) -> (i32, i32) {
    %c0_i32 = arith.constant 0 : i32
    %c0_i32_0 = arith.constant 0 : i32
    return %arg0, %c0_i32 : i32, i32
  }
  func.func @transform_2(%arg0: i32) -> (i32, i32) {
    %c0_i32 = arith.constant 0 : i32
    %c0_i32_0 = arith.constant 0 : i32
    return %arg0, %c0_i32 : i32, i32
  }
  func.func @transform_3(%arg0: i32) -> (i32, i32) {
    %c0_i32 = arith.constant 0 : i32
    %c0_i32_0 = arith.constant 0 : i32
    %c0_i32_1 = arith.constant 0 : i32
    return %c0_i32, %c0_i32_0 : i32, i32
  }
  func.func @transform_4(%arg0: i32) -> (i32, i32) {
    %c0_i32 = arith.constant 0 : i32
    %c0_i32_0 = arith.constant 0 : i32
    %c0_i32_1 = arith.constant 0 : i32
    return %c0_i32, %c0_i32_0 : i32, i32
  }
  func.func @transform_5(%arg0: i32) -> (i32, i32) {
    %c0_i32 = arith.constant 0 : i32
    %c0_i32_0 = arith.constant 0 : i32
    %c0_i32_1 = arith.constant 0 : i32
    return %c0_i32, %c0_i32_0 : i32, i32
  }
  func.func @transform_6(%arg0: i32) -> (i32, i32) {
    %c0_i32 = arith.constant 0 : i32
    %c0_i32_0 = arith.constant 0 : i32
    %c0_i32_1 = arith.constant 0 : i32
    return %c0_i32, %c0_i32_0 : i32, i32
  }
  func.func @transform_7(%arg0: i32) -> (i32, i32) {
    %c0_i32 = arith.constant 0 : i32
    %c0_i32_0 = arith.constant 0 : i32
    return %arg0, %c0_i32 : i32, i32
  }
  func.func @transform_8(%arg0: i32) -> (i32, i32) {
    %c0_i32 = arith.constant 0 : i32
    %c0_i32_0 = arith.constant 0 : i32
    return %arg0, %c0_i32 : i32, i32
  }
  func.func @transform_9(%arg0: i32) -> (i32, i32) {
    %c0_i32 = arith.constant 0 : i32
    %c0_i32_0 = arith.constant 0 : i32
    return %arg0, %c0_i32 : i32, i32
  }
  func.func @transform_10(%arg0: i32) -> (i32, i32) {
    %c0_i32 = arith.constant 0 : i32
    %c0_i32_0 = arith.constant 0 : i32
    return %arg0, %c0_i32 : i32, i32
  }
  func.func @transform_11(%arg0: i32) -> (i32, i32) {
    %c0_i32 = arith.constant 0 : i32
    %c0_i32_0 = arith.constant 0 : i32
    return %arg0, %c0_i32 : i32, i32
  }
  func.func @transform_12(%arg0: i32) -> (i32, i32) {
    %c0_i32 = arith.constant 0 : i32
    %c0_i32_0 = arith.constant 0 : i32
    return %arg0, %c0_i32 : i32, i32
  }
  func.func @transform_13(%arg0: i32) -> (i32, i32) {
    %c0_i32 = arith.constant 0 : i32
    %c0_i32_0 = arith.constant 0 : i32
    return %arg0, %c0_i32 : i32, i32
  }
}

</mosaic_0001>

<llo_original>
// kernel: tpu_custom_call.1
$region0: #{tpu_custom_call.1}
  #allocation0 [shape = 'u32[]', space=smem, size = 0x4, offset = 0x4, fixed_abs, tag = 'smem constant byte address 0x4 - core index']
  #allocation1 [shape = 'u32[144,128]{1,0:T(1,128)}', space=vmem, size = 0x12000, scoped, tag = 'internal scratch']
  %s0 = inlined_call_operand.hbm [shape: f32[16,256], index: 0, kind: input, shape index: {}]
  %s1 = inlined_call_operand.hbm [shape: f32[16,128], index: 1, kind: input, shape index: {}]
  %s2 = inlined_call_operand.hbm [shape: f32[16,128], index: 2, kind: input, shape index: {}]
  %s3 = inlined_call_operand.hbm [shape: bf16[256,512], index: 3, kind: input, shape index: {}]
  %s4 = inlined_call_operand.vmem [shape: f32[1,512], index: 4, kind: input, shape index: {}]
  %s5 = inlined_call_operand.hbm [shape: bf16[128,256], index: 5, kind: input, shape index: {}]
  %s6 = inlined_call_operand.vmem [shape: f32[1,256], index: 6, kind: input, shape index: {}]
  %s7 = inlined_call_operand.hbm [shape: f32[16,128], index: 7, kind: output, shape index: {0}]
  %s8 = inlined_call_operand.hbm [shape: f32[16,128], index: 8, kind: output, shape index: {1}]
  %s9 = inlined_call_operand.hbm [shape: f32[16,128], index: 9, kind: output, shape index: {2}]
  %s10 = inlined_call_operand.hbm [shape: f32[16,128], index: 10, kind: output, shape index: {3}]
  %s11 = inlined_call_operand.hbm [shape: f32[16,128], index: 11, kind: output, shape index: {4}]
  %s12 = inlined_call_operand.hbm [shape: f32[16,256], index: 12, kind: output, shape index: {5}]
  %s13 = inlined_call_operand.hbm [shape: f32[16,256], index: 13, kind: output, shape index: {6}]
  %14 = xla_tuple %s7, %s8, %s9, %s10, %s11, %s12, %s13
  %s15 = sld [smem:[#allocation0]]
  $region106: #{tpu_custom_call.1} parent=0
    _
  %s17 = ssub.s32 1, %s15
  %s18 = scalar_select 0, %s17, %s15
  $region1: #{tpu_custom_call.1} parent=0
    #allocation2 [shape = 'u8[16384]{0}', space=vmem, size = 0x4000, scoped, tag = 'input window, operand 0, single buffered']
    #allocation3 [shape = 's32[1]{0}', space=sflag, size = 0x4, scoped, tag = 'scoped memory for tpu_custom_call.1']
    #allocation4 [shape = 's32[1]{0}', space=sflag, size = 0x4, scoped, tag = 'scoped memory for tpu_custom_call.1']
    #allocation5 [shape = 'u8[8192]{0}', space=vmem, size = 0x2000, scoped, tag = 'input window, operand 1, single buffered']
    #allocation6 [shape = 's32[1]{0}', space=sflag, size = 0x4, scoped, tag = 'scoped memory for tpu_custom_call.1']
    #allocation7 [shape = 'u8[8192]{0}', space=vmem, size = 0x2000, scoped, tag = 'input window, operand 2, single buffered']
    #allocation8 [shape = 'u8[262144]{0}', space=vmem, size = 0x40000, scoped, tag = 'input window, operand 3, single buffered']
    #allocation9 [shape = 's32[1]{0}', space=sflag, size = 0x4, scoped, tag = 'scoped memory for tpu_custom_call.1']
    #allocation10 [shape = 'u8[65536]{0}', space=vmem, size = 0x10000, scoped, tag = 'input window, operand 5, single buffered']
    #allocation11 [shape = 'u8[8192]{0}', space=vmem, size = 0x2000, scoped, tag = 'output window, operand 0, single buffered']
    #allocation12 [shape = 'u8[8192]{0}', space=vmem, size = 0x2000, scoped, tag = 'output window, operand 1, single buffered']
    #allocation13 [shape = 's32[1]{0}', space=sflag, size = 0x4, scoped, tag = 'scoped memory for tpu_custom_call.1']
    #allocation14 [shape = 'u8[8192]{0}', space=vmem, size = 0x2000, scoped, tag = 'output window, operand 2, single buffered']
    #allocation15 [shape = 'u8[8192]{0}', space=vmem, size = 0x2000, scoped, tag = 'output window, operand 3, single buffered']
    #allocation16 [shape = 's32[1]{0}', space=sflag, size = 0x4, scoped, tag = 'scoped memory for tpu_custom_call.1']
    #allocation17 [shape = 'u8[8192]{0}', space=vmem, size = 0x2000, scoped, tag = 'output window, operand 4, single buffered']
    #allocation18 [shape = 'u8[16384]{0}', space=vmem, size = 0x4000, scoped, tag = 'output window, operand 5, single buffered']
    #allocation19 [shape = 's32[1]{0}', space=sflag, size = 0x4, scoped, tag = 'scoped memory for tpu_custom_call.1']
    #allocation20 [shape = 'u8[16384]{0}', space=vmem, size = 0x4000, scoped, tag = 'output window, operand 6, single buffered']
    %19 = vsyncpa [#allocation3], 0
    %20 = vsyncpa [#allocation6], 0
    %21 = vsyncpa [#allocation9], 0
    %22 = vsyncpa [#allocation4], 0
    %23 = vsyncpa [#allocation13], 0
    %24 = vsyncpa [#allocation16], 0
    %25 = vsyncpa [#allocation19], 0
    // Predicated region
    $region2: #{tpu_custom_call.1} parent=1 // pred_check
      _
    $region3: #{tpu_custom_call.1} parent=1 // pred_check_branch
      %27 = sbr.rel (0) target = $region5
    $region4: #{tpu_custom_call.1} parent=1 // pred_region
      %s29 = ssub.s32 512, 512
      %30 = vsyncadd [#allocation3], %s29
      %s31 = sshll.u32 [#allocation2], 4
      %s32 = int_to_ptr.vmem [resolvable:$true] %s31
      %37 = dma.hbm_to_vmem [thread:$0]  %s0, 512, %s32, [#allocation3], 256, 256, 16
    $region5: #{tpu_custom_call.1} parent=1 // pred_fallthru
      _
    // Predicated region
    $region6: #{tpu_custom_call.1} parent=1 // pred_check
      _
    $region7: #{tpu_custom_call.1} parent=1 // pred_check_branch
      %39 = sbr.rel (0) target = $region9
    $region8: #{tpu_custom_call.1} parent=1 // pred_region
      %s41 = ssub.s32 256, 256
      %42 = vsyncadd [#allocation6], %s41
      %s43 = sshll.u32 [#allocation5], 4
      %s44 = int_to_ptr.vmem [resolvable:$true] %s43
      %49 = dma.hbm_to_vmem [thread:$0]  %s1, 256, %s44, [#allocation6], 128, 128, 8
    $region9: #{tpu_custom_call.1} parent=1 // pred_fallthru
      _
    // Predicated region
    $region10: #{tpu_custom_call.1} parent=1 // pred_check
      _
    $region11: #{tpu_custom_call.1} parent=1 // pred_check_branch
      %51 = sbr.rel (0) target = $region13
    $region12: #{tpu_custom_call.1} parent=1 // pred_region
      %s53 = ssub.s32 256, 256
      %54 = vsyncadd [#allocation6], %s53
      %s55 = sshll.u32 [#allocation7], 4
      %s56 = int_to_ptr.vmem [resolvable:$true] %s55
      %61 = dma.hbm_to_vmem [thread:$0]  %s2, 256, %s56, [#allocation6], 128, 128, 8
    $region13: #{tpu_custom_call.1} parent=1 // pred_fallthru
      _
    // Predicated region
    $region14: #{tpu_custom_call.1} parent=1 // pred_check
      _
    $region15: #{tpu_custom_call.1} parent=1 // pred_check_branch
      %63 = sbr.rel (0) target = $region17
    $region16: #{tpu_custom_call.1} parent=1 // pred_region
      %s65 = ssub.s32 8192, 8192
      %66 = vsyncadd [#allocation9], %s65
      %s67 = sshll.u32 [#allocation8], 4
      %s68 = int_to_ptr.vmem [resolvable:$true] %s67
      %73 = dma.hbm_to_vmem [thread:$0]  %s3, 8192, %s68, [#allocation9], 256, 256, 16
    $region17: #{tpu_custom_call.1} parent=1 // pred_fallthru
      _
    // Predicated region
    $region18: #{tpu_custom_call.1} parent=1 // pred_check
      _
    $region19: #{tpu_custom_call.1} parent=1 // pred_check_branch
      %75 = sbr.rel (0) target = $region21
    $region20: #{tpu_custom_call.1} parent=1 // pred_region
      _
    $region21: #{tpu_custom_call.1} parent=1 // pred_fallthru
      _
    // Predicated region
    $region22: #{tpu_custom_call.1} parent=1 // pred_check
      _
    $region23: #{tpu_custom_call.1} parent=1 // pred_check_branch
      %77 = sbr.rel (0) target = $region25
    $region24: #{tpu_custom_call.1} parent=1 // pred_region
      %s79 = ssub.s32 2048, 2048
      %80 = vsyncadd [#allocation9], %s79
      %s81 = sshll.u32 [#allocation10], 4
      %s82 = int_to_ptr.vmem [resolvable:$true] %s81
      %87 = dma.hbm_to_vmem [thread:$0]  %s5, 2048, %s82, [#allocation9], 128, 128, 8
    $region25: #{tpu_custom_call.1} parent=1 // pred_fallthru
      _
    // Predicated region
    $region26: #{tpu_custom_call.1} parent=1 // pred_check
      _
    $region27: #{tpu_custom_call.1} parent=1 // pred_check_branch
      %89 = sbr.rel (0) target = $region29
    $region28: #{tpu_custom_call.1} parent=1 // pred_region
      _
    $region29: #{tpu_custom_call.1} parent=1 // pred_fallthru
      _
    // Predicated region
    $region30: #{tpu_custom_call.1} parent=1 // pred_check
      _
    $region31: #{tpu_custom_call.1} parent=1 // pred_check_branch
      %91 = sbr.rel (0) target = $region33
    $region32: #{tpu_custom_call.1} parent=1 // pred_region
      %92 = dma.done [#allocation3], 512
    $region33: #{tpu_custom_call.1} parent=1 // pred_fallthru
      _
    // Predicated region
    $region34: #{tpu_custom_call.1} parent=1 // pred_check
      _
    $region35: #{tpu_custom_call.1} parent=1 // pred_check_branch
      %94 = sbr.rel (0) target = $region37
    $region36: #{tpu_custom_call.1} parent=1 // pred_region
      %95 = dma.done [#allocation6], 256
    $region37: #{tpu_custom_call.1} parent=1 // pred_fallthru
      _
    // Predicated region
    $region38: #{tpu_custom_call.1} parent=1 // pred_check
      _
    $region39: #{tpu_custom_call.1} parent=1 // pred_check_branch
      %97 = sbr.rel (0) target = $region41
    $region40: #{tpu_custom_call.1} parent=1 // pred_region
      %98 = dma.done [#allocation6], 256
    $region41: #{tpu_custom_call.1} parent=1 // pred_fallthru
      _
    // Predicated region
    $region42: #{tpu_custom_call.1} parent=1 // pred_check
      _
    $region43: #{tpu_custom_call.1} parent=1 // pred_check_branch
      %100 = sbr.rel (0) target = $region45
    $region44: #{tpu_custom_call.1} parent=1 // pred_region
      %101 = dma.done [#allocation9], 8192
    $region45: #{tpu_custom_call.1} parent=1 // pred_fallthru
      _
    // Predicated region
    $region46: #{tpu_custom_call.1} parent=1 // pred_check
      _
    $region47: #{tpu_custom_call.1} parent=1 // pred_check_branch
      %103 = sbr.rel (0) target = $region49
    $region48: #{tpu_custom_call.1} parent=1 // pred_region
      %104 = dma.done [#allocation9], 2048
    $region49: #{tpu_custom_call.1} parent=1 // pred_fallthru
      _
    %v106 = vld [vmem:[#allocation2] sm:$0xff]
    %v107 = vld [vmem:[#allocation2 + $0x8] sm:$0xff]
    %v108 = vld [vmem:[#allocation2 + $0x10] sm:$0xff]
    %v109 = vld [vmem:[#allocation2 + $0x18] sm:$0xff]
    %v110 = vpack.c.bf16 %v108, %v106
    %v111 = vpack.c.bf16 %v109, %v107
    %v112 = vld [vmem:[#allocation8] sm:$0xff]
    %v113 = vld [vmem:[#allocation8 + $0x8] sm:$0xff]
    %v114 = vld [vmem:[#allocation8 + $0x10] sm:$0xff]
    %v115 = vld [vmem:[#allocation8 + $0x18] sm:$0xff]
    %v116 = vld [vmem:[#allocation8 + $0x20] sm:$0xff]
    %v117 = vld [vmem:[#allocation8 + $0x28] sm:$0xff]
    %v118 = vld [vmem:[#allocation8 + $0x30] sm:$0xff]
    %v119 = vld [vmem:[#allocation8 + $0x38] sm:$0xff]
    %v120 = vld [vmem:[#allocation8 + $0x40] sm:$0xff]
    %v121 = vld [vmem:[#allocation8 + $0x48] sm:$0xff]
    %v122 = vld [vmem:[#allocation8 + $0x50] sm:$0xff]
    %v123 = vld [vmem:[#allocation8 + $0x58] sm:$0xff]
    %v124 = vld [vmem:[#allocation8 + $0x60] sm:$0xff]
    %v125 = vld [vmem:[#allocation8 + $0x68] sm:$0xff]
    %v126 = vld [vmem:[#allocation8 + $0x70] sm:$0xff]
    %v127 = vld [vmem:[#allocation8 + $0x78] sm:$0xff]
    %v128 = vld [vmem:[#allocation8 + $0x80] sm:$0xff]
    %v129 = vld [vmem:[#allocation8 + $0x88] sm:$0xff]
    %v130 = vld [vmem:[#allocation8 + $0x90] sm:$0xff]
    %v131 = vld [vmem:[#allocation8 + $0x98] sm:$0xff]
    %v132 = vld [vmem:[#allocation8 + $0xa0] sm:$0xff]
    %v133 = vld [vmem:[#allocation8 + $0xa8] sm:$0xff]
    %v134 = vld [vmem:[#allocation8 + $0xb0] sm:$0xff]
    %v135 = vld [vmem:[#allocation8 + $0xb8] sm:$0xff]
    %v136 = vld [vmem:[#allocation8 + $0xc0] sm:$0xff]
    %v137 = vld [vmem:[#allocation8 + $0xc8] sm:$0xff]
    %v138 = vld [vmem:[#allocation8 + $0xd0] sm:$0xff]
    %v139 = vld [vmem:[#allocation8 + $0xd8] sm:$0xff]
    %v140 = vld [vmem:[#allocation8 + $0xe0] sm:$0xff]
    %v141 = vld [vmem:[#allocation8 + $0xe8] sm:$0xff]
    %v142 = vld [vmem:[#allocation8 + $0xf0] sm:$0xff]
    %v143 = vld [vmem:[#allocation8 + $0xf8] sm:$0xff]
    %v144 = vld [vmem:[#allocation8 + $0x100] sm:$0xff]
    %v145 = vld [vmem:[#allocation8 + $0x108] sm:$0xff]
    %v146 = vld [vmem:[#allocation8 + $0x110] sm:$0xff]
    %v147 = vld [vmem:[#allocation8 + $0x118] sm:$0xff]
    %v148 = vld [vmem:[#allocation8 + $0x120] sm:$0xff]
    %v149 = vld [vmem:[#allocation8 + $0x128] sm:$0xff]
    %v150 = vld [vmem:[#allocation8 + $0x130] sm:$0xff]
    %v151 = vld [vmem:[#allocation8 + $0x138] sm:$0xff]
    %v152 = vld [vmem:[#allocation8 + $0x140] sm:$0xff]
    %v153 = vld [vmem:[#allocation8 + $0x148] sm:$0xff]
    %v154 = vld [vmem:[#allocation8 + $0x150] sm:$0xff]
    %v155 = vld [vmem:[#allocation8 + $0x158] sm:$0xff]
    %v156 = vld [vmem:[#allocation8 + $0x160] sm:$0xff]
    %v157 = vld [vmem:[#allocation8 + $0x168] sm:$0xff]
    %v158 = vld [vmem:[#allocation8 + $0x170] sm:$0xff]
    %v159 = vld [vmem:[#allocation8 + $0x178] sm:$0xff]
    %v160 = vld [vmem:[#allocation8 + $0x180] sm:$0xff]
    %v161 = vld [vmem:[#allocation8 + $0x188] sm:$0xff]
    %v162 = vld [vmem:[#allocation8 + $0x190] sm:$0xff]
    %v163 = vld [vmem:[#allocation8 + $0x198] sm:$0xff]
    %v164 = vld [vmem:[#allocation8 + $0x1a0] sm:$0xff]
    %v165 = vld [vmem:[#allocation8 + $0x1a8] sm:$0xff]
    %v166 = vld [vmem:[#allocation8 + $0x1b0] sm:$0xff]
    %v167 = vld [vmem:[#allocation8 + $0x1b8] sm:$0xff]
    %v168 = vld [vmem:[#allocation8 + $0x1c0] sm:$0xff]
    %v169 = vld [vmem:[#allocation8 + $0x1c8] sm:$0xff]
    %v170 = vld [vmem:[#allocation8 + $0x1d0] sm:$0xff]
    %v171 = vld [vmem:[#allocation8 + $0x1d8] sm:$0xff]
    %v172 = vld [vmem:[#allocation8 + $0x1e0] sm:$0xff]
    %v173 = vld [vmem:[#allocation8 + $0x1e8] sm:$0xff]
    %v174 = vld [vmem:[#allocation8 + $0x1f0] sm:$0xff]
    %v175 = vld [vmem:[#allocation8 + $0x1f8] sm:$0xff]
    %v176 = vld [vmem:[%s4] sm:$0xf]
    %v178 = vlaneseq
    %v179 = vshrl.u32 %v178, 7
    %v180 = vsub.s32 0, %v179
    %v181 = vrot.slane %v176, %v180
    %v182 = vlaneseq
    %v183 = vshrl.u32 %v182, 7
    %v184 = vsub.s32 1, %v183
    %v185 = vrot.slane %v176, %v184
    %v186 = vlaneseq
    %v187 = vshrl.u32 %v186, 7
    %v188 = vsub.s32 2, %v187
    %v189 = vrot.slane %v176, %v188
    %v190 = vlaneseq
    %v191 = vshrl.u32 %v190, 7
    %v192 = vsub.s32 3, %v191
    %v193 = vrot.slane %v176, %v192
    %v262 = vunpack.c.l.b16 %v112
    %v263 = vunpack.c.h.b16 %v112
    %v264 = vunpack.c.l.b16 %v113
    %v265 = vunpack.c.h.b16 %v113
    %v266 = vunpack.c.l.b16 %v114
    %v267 = vunpack.c.h.b16 %v114
    %v268 = vunpack.c.l.b16 %v115
    %v269 = vunpack.c.h.b16 %v115
    %v270 = vunpack.c.l.b16 %v116
    %v271 = vunpack.c.h.b16 %v116
    %v272 = vunpack.c.l.b16 %v117
    %v273 = vunpack.c.h.b16 %v117
    %v274 = vunpack.c.l.b16 %v118
    %v275 = vunpack.c.h.b16 %v118
    %v276 = vunpack.c.l.b16 %v119
    %v277 = vunpack.c.h.b16 %v119
    %v278 = vunpack.c.l.b16 %v120
    %v279 = vunpack.c.h.b16 %v120
    %v280 = vunpack.c.l.b16 %v121
    %v281 = vunpack.c.h.b16 %v121
    %v282 = vunpack.c.l.b16 %v122
    %v283 = vunpack.c.h.b16 %v122
    %v284 = vunpack.c.l.b16 %v123
    %v285 = vunpack.c.h.b16 %v123
    %v286 = vunpack.c.l.b16 %v124
    %v287 = vunpack.c.h.b16 %v124
    %v288 = vunpack.c.l.b16 %v125
    %v289 = vunpack.c.h.b16 %v125
    %v290 = vunpack.c.l.b16 %v126
    %v291 = vunpack.c.h.b16 %v126
    %v292 = vunpack.c.l.b16 %v127
    %v293 = vunpack.c.h.b16 %v127
    %v294 = vunpack.c.l.b16 %v128
    %v295 = vunpack.c.h.b16 %v128
    %v296 = vunpack.c.l.b16 %v129
    %v297 = vunpack.c.h.b16 %v129
    %v298 = vunpack.c.l.b16 %v130
    %v299 = vunpack.c.h.b16 %v130
    %v300 = vunpack.c.l.b16 %v131
    %v301 = vunpack.c.h.b16 %v131
    %v302 = vunpack.c.l.b16 %v132
    %v303 = vunpack.c.h.b16 %v132
    %v304 = vunpack.c.l.b16 %v133
    %v305 = vunpack.c.h.b16 %v133
    %v306 = vunpack.c.l.b16 %v134
    %v307 = vunpack.c.h.b16 %v134
    %v308 = vunpack.c.l.b16 %v135
    %v309 = vunpack.c.h.b16 %v135
    %v310 = vunpack.c.l.b16 %v136
    %v311 = vunpack.c.h.b16 %v136
    %v312 = vunpack.c.l.b16 %v137
    %v313 = vunpack.c.h.b16 %v137
    %v314 = vunpack.c.l.b16 %v138
    %v315 = vunpack.c.h.b16 %v138
    %v316 = vunpack.c.l.b16 %v139
    %v317 = vunpack.c.h.b16 %v139
    %v318 = vunpack.c.l.b16 %v140
    %v319 = vunpack.c.h.b16 %v140
    %v320 = vunpack.c.l.b16 %v141
    %v321 = vunpack.c.h.b16 %v141
    %v322 = vunpack.c.l.b16 %v142
    %v323 = vunpack.c.h.b16 %v142
    %v324 = vunpack.c.l.b16 %v143
    %v325 = vunpack.c.h.b16 %v143
    %v326 = vunpack.c.l.b16 %v144
    %v327 = vunpack.c.h.b16 %v144
    %v328 = vunpack.c.l.b16 %v145
    %v329 = vunpack.c.h.b16 %v145
    %v330 = vunpack.c.l.b16 %v146
    %v331 = vunpack.c.h.b16 %v146
    %v332 = vunpack.c.l.b16 %v147
    %v333 = vunpack.c.h.b16 %v147
    %v334 = vunpack.c.l.b16 %v148
    %v335 = vunpack.c.h.b16 %v148
    %v336 = vunpack.c.l.b16 %v149
    %v337 = vunpack.c.h.b16 %v149
    %v338 = vunpack.c.l.b16 %v150
    %v339 = vunpack.c.h.b16 %v150
    %v340 = vunpack.c.l.b16 %v151
    %v341 = vunpack.c.h.b16 %v151
    %v342 = vunpack.c.l.b16 %v152
    %v343 = vunpack.c.h.b16 %v152
    %v344 = vunpack.c.l.b16 %v153
    %v345 = vunpack.c.h.b16 %v153
    %v346 = vunpack.c.l.b16 %v154
    %v347 = vunpack.c.h.b16 %v154
    %v348 = vunpack.c.l.b16 %v155
    %v349 = vunpack.c.h.b16 %v155
    %v350 = vunpack.c.l.b16 %v156
    %v351 = vunpack.c.h.b16 %v156
    %v352 = vunpack.c.l.b16 %v157
    %v353 = vunpack.c.h.b16 %v157
    %v354 = vunpack.c.l.b16 %v158
    %v355 = vunpack.c.h.b16 %v158
    %v356 = vunpack.c.l.b16 %v159
    %v357 = vunpack.c.h.b16 %v159
    %v358 = vunpack.c.l.b16 %v160
    %v359 = vunpack.c.h.b16 %v160
    %v360 = vunpack.c.l.b16 %v161
    %v361 = vunpack.c.h.b16 %v161
    %v362 = vunpack.c.l.b16 %v162
    %v363 = vunpack.c.h.b16 %v162
    %v364 = vunpack.c.l.b16 %v163
    %v365 = vunpack.c.h.b16 %v163
    %v366 = vunpack.c.l.b16 %v164
    %v367 = vunpack.c.h.b16 %v164
    %v368 = vunpack.c.l.b16 %v165
    %v369 = vunpack.c.h.b16 %v165
    %v370 = vunpack.c.l.b16 %v166
    %v371 = vunpack.c.h.b16 %v166
    %v372 = vunpack.c.l.b16 %v167
    %v373 = vunpack.c.h.b16 %v167
    %v374 = vunpack.c.l.b16 %v168
    %v375 = vunpack.c.h.b16 %v168
    %v376 = vunpack.c.l.b16 %v169
    %v377 = vunpack.c.h.b16 %v169
    %v378 = vunpack.c.l.b16 %v170
    %v379 = vunpack.c.h.b16 %v170
    %v380 = vunpack.c.l.b16 %v171
    %v381 = vunpack.c.h.b16 %v171
    %v382 = vunpack.c.l.b16 %v172
    %v383 = vunpack.c.h.b16 %v172
    %v384 = vunpack.c.l.b16 %v173
    %v385 = vunpack.c.h.b16 %v173
    %v386 = vunpack.c.l.b16 %v174
    %v387 = vunpack.c.h.b16 %v174
    %v388 = vunpack.c.l.b16 %v175
    %v389 = vunpack.c.h.b16 %v175
    %v390 = vpack.c.b16 %v266, %v262
    %v391 = vpack.c.b16 %v267, %v263
    %v392 = vpack.c.b16 %v268, %v264
    %v393 = vpack.c.b16 %v269, %v265
    %v394 = vpack.c.b16 %v274, %v270
    %v395 = vpack.c.b16 %v275, %v271
    %v396 = vpack.c.b16 %v276, %v272
    %v397 = vpack.c.b16 %v277, %v273
    %v398 = vpack.c.b16 %v282, %v278
    %v399 = vpack.c.b16 %v283, %v279
    %v400 = vpack.c.b16 %v284, %v280
    %v401 = vpack.c.b16 %v285, %v281
    %v402 = vpack.c.b16 %v290, %v286
    %v403 = vpack.c.b16 %v291, %v287
    %v404 = vpack.c.b16 %v292, %v288
    %v405 = vpack.c.b16 %v293, %v289
    %v406 = vpack.c.b16 %v298, %v294
    %v407 = vpack.c.b16 %v299, %v295
    %v408 = vpack.c.b16 %v300, %v296
    %v409 = vpack.c.b16 %v301, %v297
    %v410 = vpack.c.b16 %v306, %v302
    %v411 = vpack.c.b16 %v307, %v303
    %v412 = vpack.c.b16 %v308, %v304
    %v413 = vpack.c.b16 %v309, %v305
    %v414 = vpack.c.b16 %v314, %v310
    %v415 = vpack.c.b16 %v315, %v311
    %v416 = vpack.c.b16 %v316, %v312
    %v417 = vpack.c.b16 %v317, %v313
    %v418 = vpack.c.b16 %v322, %v318
    %v419 = vpack.c.b16 %v323, %v319
    %v420 = vpack.c.b16 %v324, %v320
    %v421 = vpack.c.b16 %v325, %v321
    %v422 = vpack.c.b16 %v330, %v326
    %v423 = vpack.c.b16 %v331, %v327
    %v424 = vpack.c.b16 %v332, %v328
    %v425 = vpack.c.b16 %v333, %v329
    %v426 = vpack.c.b16 %v338, %v334
    %v427 = vpack.c.b16 %v339, %v335
    %v428 = vpack.c.b16 %v340, %v336
    %v429 = vpack.c.b16 %v341, %v337
    %v430 = vpack.c.b16 %v346, %v342
    %v431 = vpack.c.b16 %v347, %v343
    %v432 = vpack.c.b16 %v348, %v344
    %v433 = vpack.c.b16 %v349, %v345
    %v434 = vpack.c.b16 %v354, %v350
    %v435 = vpack.c.b16 %v355, %v351
    %v436 = vpack.c.b16 %v356, %v352
    %v437 = vpack.c.b16 %v357, %v353
    %v438 = vpack.c.b16 %v362, %v358
    %v439 = vpack.c.b16 %v363, %v359
    %v440 = vpack.c.b16 %v364, %v360
    %v441 = vpack.c.b16 %v365, %v361
    %v442 = vpack.c.b16 %v370, %v366
    %v443 = vpack.c.b16 %v371, %v367
    %v444 = vpack.c.b16 %v372, %v368
    %v445 = vpack.c.b16 %v373, %v369
    %v446 = vpack.c.b16 %v378, %v374
    %v447 = vpack.c.b16 %v379, %v375
    %v448 = vpack.c.b16 %v380, %v376
    %v449 = vpack.c.b16 %v381, %v377
    %v450 = vpack.c.b16 %v386, %v382
    %v451 = vpack.c.b16 %v387, %v383
    %v452 = vpack.c.b16 %v388, %v384
    %v453 = vpack.c.b16 %v389, %v385
    %518 = vmatprep.subr.bf16.mxu0 %v419
    %519 = vmatpush1.bf16.msra.mxu0 %v418
    %520 = vmatprep.subr.bf16.mxu0 %v415
    %521 = vmatpush1.bf16.msra.mxu0 %v414
    %522 = vmatprep.subr.bf16.mxu0 %v411
    %523 = vmatpush1.bf16.msra.mxu0 %v410
    %524 = vmatprep.subr.bf16.mxu0 %v407
    %525 = vmatpush1.bf16.msra.mxu0 %v406
    %526 = vmatprep.subr.bf16.mxu0 %v403
    %527 = vmatpush1.bf16.msra.mxu0 %v402
    %528 = vmatprep.subr.bf16.mxu0 %v399
    %529 = vmatpush1.bf16.msra.mxu0 %v398
    %530 = vmatprep.subr.bf16.mxu0 %v395
    %531 = vmatpush1.bf16.msra.mxu0 %v394
    %532 = vmatprep.subr.bf16.mxu0 %v391
    %533 = vmatpush1.bf16.msra.mxu0 %v390
    %534 = vmatprep.subr.bf16.mxu0 %v451
    %535 = vmatpush2.bf16.msra.mxu0 %v450
    %536 = vmatprep.subr.bf16.mxu0 %v447
    %537 = vmatpush2.bf16.msra.mxu0 %v446
    %538 = vmatprep.subr.bf16.mxu0 %v443
    %539 = vmatpush2.bf16.msra.mxu0 %v442
    %540 = vmatprep.subr.bf16.mxu0 %v439
    %541 = vmatpush2.bf16.msra.mxu0 %v438
    %542 = vmatprep.subr.bf16.mxu0 %v435
    %543 = vmatpush2.bf16.msra.mxu0 %v434
    %544 = vmatprep.subr.bf16.mxu0 %v431
    %545 = vmatpush2.bf16.msra.mxu0 %v430
    %546 = vmatprep.subr.bf16.mxu0 %v427
    %547 = vmatpush2.bf16.msra.mxu0 %v426
    %548 = vmatprep.subr.bf16.mxu0 %v423
    %549 = vmatpush2.bf16.msra.mxu0 %v422
    %550 = vmatprep.mubr.bf16.mxu0 %v111
    %551 = vmatmul.mubr.bf16.gmra.mxu0 %v110
    %v552 = vpop.f32.mrf.mxu0
    %v553 = vadd.f32 %v181, %v552
    %v554 = vpop.f32.mrf.mxu0
    %v555 = vadd.f32 %v185, %v554
    %v556 = vpop.f32.mrf.mxu0
    %v557 = vadd.f32 %v181, %v556
    %v558 = vpop.f32.mrf.mxu0
    %v559 = vadd.f32 %v185, %v558
    %560 = vdwg.mxu0
    %561 = vmatprep.subr.bf16.mxu0 %v421
    %562 = vmatpush1.bf16.msra.mxu0 %v420
    %563 = vmatprep.subr.bf16.mxu0 %v417
    %564 = vmatpush1.bf16.msra.mxu0 %v416
    %565 = vmatprep.subr.bf16.mxu0 %v413
    %566 = vmatpush1.bf16.msra.mxu0 %v412
    %567 = vmatprep.subr.bf16.mxu0 %v409
    %568 = vmatpush1.bf16.msra.mxu0 %v408
    %569 = vmatprep.subr.bf16.mxu0 %v405
    %570 = vmatpush1.bf16.msra.mxu0 %v404
    %571 = vmatprep.subr.bf16.mxu0 %v401
    %572 = vmatpush1.bf16.msra.mxu0 %v400
    %573 = vmatprep.subr.bf16.mxu0 %v397
    %574 = vmatpush1.bf16.msra.mxu0 %v396
    %575 = vmatprep.subr.bf16.mxu0 %v393
    %576 = vmatpush1.bf16.msra.mxu0 %v392
    %577 = vmatprep.subr.bf16.mxu0 %v453
    %578 = vmatpush2.bf16.msra.mxu0 %v452
    %579 = vmatprep.subr.bf16.mxu0 %v449
    %580 = vmatpush2.bf16.msra.mxu0 %v448
    %581 = vmatprep.subr.bf16.mxu0 %v445
    %582 = vmatpush2.bf16.msra.mxu0 %v444
    %583 = vmatprep.subr.bf16.mxu0 %v441
    %584 = vmatpush2.bf16.msra.mxu0 %v440
    %585 = vmatprep.subr.bf16.mxu0 %v437
    %586 = vmatpush2.bf16.msra.mxu0 %v436
    %587 = vmatprep.subr.bf16.mxu0 %v433
    %588 = vmatpush2.bf16.msra.mxu0 %v432
    %589 = vmatprep.subr.bf16.mxu0 %v429
    %590 = vmatpush2.bf16.msra.mxu0 %v428
    %591 = vmatprep.subr.bf16.mxu0 %v425
    %592 = vmatpush2.bf16.msra.mxu0 %v424
    %593 = vmatprep.mubr.bf16.mxu0 %v111
    %594 = vmatmul.mubr.bf16.gmra.mxu0 %v110
    %v595 = vpop.f32.mrf.mxu0
    %v596 = vadd.f32 %v189, %v595
    %v597 = vpop.f32.mrf.mxu0
    %v598 = vadd.f32 %v193, %v597
    %v599 = vpop.f32.mrf.mxu0
    %v600 = vadd.f32 %v189, %v599
    %v601 = vpop.f32.mrf.mxu0
    %v602 = vadd.f32 %v193, %v601
    %603 = vdwg.mxu0
    %v604 = vmul.f32 %v555, 0.5
    %v605 = vmul.f32 %v559, 0.5
    %v606 = vmul.f32 %v604, 1.442695
    %v607 = vpow.pop %v606
    %v608 = vmul.f32 %v605, 1.442695
    %v609 = vpow.pop %v608
    %v610 = vmul.f32 %v598, 0.5
    %v611 = vmul.f32 %v602, 0.5
    %v612 = vmul.f32 %v610, 1.442695
    %v613 = vpow.pop %v612
    %v614 = vmul.f32 %v611, 1.442695
    %v615 = vpow.pop %v614
    %v616 = vld [vmem:[#allocation5] sm:$0xff]
    %v617 = vld [vmem:[#allocation5 + $0x8] sm:$0xff]
    %v618 = vmul.f32 %v616, %v607
    %v619 = vmul.f32 %v617, %v609
    %v620 = vadd.f32 %v553, %v618
    %v621 = vadd.f32 %v557, %v619
    %v622 = vld [vmem:[#allocation7] sm:$0xff]
    %v623 = vld [vmem:[#allocation7 + $0x8] sm:$0xff]
    %v624 = vmul.f32 %v622, %v613
    %v625 = vmul.f32 %v623, %v615
    %v626 = vadd.f32 %v596, %v624
    %v627 = vadd.f32 %v600, %v625
    %v628 = vmul.f32 %v607, %v607
    %v629 = vmul.f32 %v609, %v609
    %v630 = vmul.f32 %v553, %v553
    %v631 = vmul.f32 %v557, %v557
    %v632 = vadd.f32 %v628, %v630
    %v633 = vadd.f32 %v629, %v631
    %v634 = vsub.f32 %v632, 1.0
    %v635 = vsub.f32 %v633, 1.0
    %v636 = vsub.f32 %v634, %v555
    %v637 = vsub.f32 %v635, %v559
    %v638 = vmul.f32 %v636, 0.5
    %v639 = vmul.f32 %v637, 0.5
    %v640 = vmul.f32 %v613, %v613
    %v641 = vmul.f32 %v615, %v615
    %v642 = vmul.f32 %v596, %v596
    %v643 = vmul.f32 %v600, %v600
    %v644 = vadd.f32 %v640, %v642
    %v645 = vadd.f32 %v641, %v643
    %v646 = vsub.f32 %v644, 1.0
    %v647 = vsub.f32 %v645, 1.0
    %v648 = vsub.f32 %v646, %v598
    %v649 = vsub.f32 %v647, %v602
    %v650 = vmul.f32 %v648, 0.5
    %v651 = vmul.f32 %v649, 0.5
    %v652 = vmul.f32 %v626, %v626
    %v653 = vmul.f32 %v627, %v627
    %v654 = vlaneseq
    %v655 = vand.u32 %v654, 127
    %v656 = vand.u32 %v655, 15
    %vm657 = vcmp.ge.s32.totalorder %v656, 15
    %vm658 = vcmp.ge.s32.totalorder %v656, 14
    %659 = vrot.lane.b32.xlu0 %v652, 127
    %v660 = vpop.permute.xlu0 %659
    %661 = vrot.lane.b32.xlu0 %v653, 127
    %v662 = vpop.permute.xlu0 %661
    %663 = vrot.lane.b32.xlu0 %v652, 15
    %v664 = vpop.permute.xlu0 %663
    %665 = vrot.lane.b32.xlu0 %v653, 15
    %v666 = vpop.permute.xlu0 %665
    %v667 = vsel %vm657, %v664, %v660
    %v668 = vsel %vm657, %v666, %v662
    %v669 = vadd.f32 %v652, %v667
    %v670 = vadd.f32 %v653, %v668
    %671 = vrot.lane.b32.xlu0 %v652, 126
    %v672 = vpop.permute.xlu0 %671
    %673 = vrot.lane.b32.xlu0 %v653, 126
    %v674 = vpop.permute.xlu0 %673
    %675 = vrot.lane.b32.xlu0 %v652, 14
    %v676 = vpop.permute.xlu0 %675
    %677 = vrot.lane.b32.xlu0 %v653, 14
    %v678 = vpop.permute.xlu0 %677
    %v679 = vsel %vm658, %v676, %v672
    %v680 = vsel %vm658, %v678, %v674
    %v681 = vadd.f32 %v669, %v679
    %v682 = vadd.f32 %v670, %v680
    %v683 = vadd.f32 %v681, 1e-06
    %v684 = vadd.f32 %v682, 1e-06
    %v685 = vrsqrt.pop %v683
    %v686 = vrsqrt.pop %v684
    %v687 = vmul.f32 %v620, %v685
    %v688 = vmul.f32 %v621, %v686
    %v689 = vpack.c.bf16 %v688, %v687
    %v690 = vld [vmem:[#allocation10] sm:$0xff]
    %v691 = vld [vmem:[#allocation10 + $0x8] sm:$0xff]
    %v692 = vld [vmem:[#allocation10 + $0x10] sm:$0xff]
    %v693 = vld [vmem:[#allocation10 + $0x18] sm:$0xff]
    %v694 = vld [vmem:[#allocation10 + $0x20] sm:$0xff]
    %v695 = vld [vmem:[#allocation10 + $0x28] sm:$0xff]
    %v696 = vld [vmem:[#allocation10 + $0x30] sm:$0xff]
    %v697 = vld [vmem:[#allocation10 + $0x38] sm:$0xff]
    %v698 = vld [vmem:[#allocation10 + $0x40] sm:$0xff]
    %v699 = vld [vmem:[#allocation10 + $0x48] sm:$0xff]
    %v700 = vld [vmem:[#allocation10 + $0x50] sm:$0xff]
    %v701 = vld [vmem:[#allocation10 + $0x58] sm:$0xff]
    %v702 = vld [vmem:[#allocation10 + $0x60] sm:$0xff]
    %v703 = vld [vmem:[#allocation10 + $0x68] sm:$0xff]
    %v704 = vld [vmem:[#allocation10 + $0x70] sm:$0xff]
    %v705 = vld [vmem:[#allocation10 + $0x78] sm:$0xff]
    %v706 = vld [vmem:[%s6] sm:$0x3]
    %v708 = vlaneseq
    %v709 = vshrl.u32 %v708, 7
    %v710 = vsub.s32 0, %v709
    %v711 = vrot.slane %v706, %v710
    %v712 = vlaneseq
    %v713 = vshrl.u32 %v712, 7
    %v714 = vsub.s32 1, %v713
    %v715 = vrot.slane %v706, %v714
    %v734 = vunpack.c.l.b16 %v690
    %v735 = vunpack.c.h.b16 %v690
    %v736 = vunpack.c.l.b16 %v691
    %v737 = vunpack.c.h.b16 %v691
    %v738 = vunpack.c.l.b16 %v692
    %v739 = vunpack.c.h.b16 %v692
    %v740 = vunpack.c.l.b16 %v693
    %v741 = vunpack.c.h.b16 %v693
    %v742 = vunpack.c.l.b16 %v694
    %v743 = vunpack.c.h.b16 %v694
    %v744 = vunpack.c.l.b16 %v695
    %v745 = vunpack.c.h.b16 %v695
    %v746 = vunpack.c.l.b16 %v696
    %v747 = vunpack.c.h.b16 %v696
    %v748 = vunpack.c.l.b16 %v697
    %v749 = vunpack.c.h.b16 %v697
    %v750 = vunpack.c.l.b16 %v698
    %v751 = vunpack.c.h.b16 %v698
    %v752 = vunpack.c.l.b16 %v699
    %v753 = vunpack.c.h.b16 %v699
    %v754 = vunpack.c.l.b16 %v700
    %v755 = vunpack.c.h.b16 %v700
    %v756 = vunpack.c.l.b16 %v701
    %v757 = vunpack.c.h.b16 %v701
    %v758 = vunpack.c.l.b16 %v702
    %v759 = vunpack.c.h.b16 %v702
    %v760 = vunpack.c.l.b16 %v703
    %v761 = vunpack.c.h.b16 %v703
    %v762 = vunpack.c.l.b16 %v704
    %v763 = vunpack.c.h.b16 %v704
    %v764 = vunpack.c.l.b16 %v705
    %v765 = vunpack.c.h.b16 %v705
    %v766 = vpack.c.b16 %v736, %v734
    %v767 = vpack.c.b16 %v737, %v735
    %v768 = vpack.c.b16 %v740, %v738
    %v769 = vpack.c.b16 %v741, %v739
    %v770 = vpack.c.b16 %v744, %v742
    %v771 = vpack.c.b16 %v745, %v743
    %v772 = vpack.c.b16 %v748, %v746
    %v773 = vpack.c.b16 %v749, %v747
    %v774 = vpack.c.b16 %v752, %v750
    %v775 = vpack.c.b16 %v753, %v751
    %v776 = vpack.c.b16 %v756, %v754
    %v777 = vpack.c.b16 %v757, %v755
    %v778 = vpack.c.b16 %v760, %v758
    %v779 = vpack.c.b16 %v761, %v759
    %v780 = vpack.c.b16 %v764, %v762
    %v781 = vpack.c.b16 %v765, %v763
    %798 = vmatprep.subr.bf16.mxu0 %v781
    %799 = vmatpush1.bf16.msra.mxu0 %v780
    %800 = vmatprep.subr.bf16.mxu0 %v779
    %801 = vmatpush1.bf16.msra.mxu0 %v778
    %802 = vmatprep.subr.bf16.mxu0 %v777
    %803 = vmatpush1.bf16.msra.mxu0 %v776
    %804 = vmatprep.subr.bf16.mxu0 %v775
    %805 = vmatpush1.bf16.msra.mxu0 %v774
    %806 = vmatprep.subr.bf16.mxu0 %v773
    %807 = vmatpush1.bf16.msra.mxu0 %v772
    %808 = vmatprep.subr.bf16.mxu0 %v771
    %809 = vmatpush1.bf16.msra.mxu0 %v770
    %810 = vmatprep.subr.bf16.mxu0 %v769
    %811 = vmatpush1.bf16.msra.mxu0 %v768
    %812 = vmatprep.subr.bf16.mxu0 %v767
    %813 = vmatpush1.bf16.msra.mxu0 %v766
    %814 = vmatprep.subr.bf16.mxu0 0
    %815 = vmatpush2.bf16.msra.mxu0 0
    %816 = vmatprep.subr.bf16.mxu0 0
    %817 = vmatpush2.bf16.msra.mxu0 0
    %818 = vmatprep.subr.bf16.mxu0 0
    %819 = vmatpush2.bf16.msra.mxu0 0
    %820 = vmatprep.subr.bf16.mxu0 0
    %821 = vmatpush2.bf16.msra.mxu0 0
    %822 = vmatprep.subr.bf16.mxu0 0
    %823 = vmatpush2.bf16.msra.mxu0 0
    %824 = vmatprep.subr.bf16.mxu0 0
    %825 = vmatpush2.bf16.msra.mxu0 0
    %826 = vmatprep.subr.bf16.mxu0 0
    %827 = vmatpush2.bf16.msra.mxu0 0
    %828 = vmatprep.subr.bf16.mxu0 0
    %829 = vmatpush2.bf16.msra.mxu0 0
    %830 = vmatprep.mubr.bf16.mxu0 0
    %831 = vmatmul.mubr.bf16.gmra.mxu0 %v689
    %v832 = vpop.f32.mrf.mxu0
    %v833 = vadd.f32 %v711, %v832
    %v834 = vpop.f32.mrf.mxu0
    %v835 = vadd.f32 %v715, %v834
    %v836 = vpop.f32.mrf.mxu0
    %v837 = vadd.f32 %v711, %v836
    %v838 = vpop.f32.mrf.mxu0
    %v839 = vadd.f32 %v715, %v838
    %840 = vdwg.mxu0
    %v841 = vand.u32 2147483647, %v833
    %v842 = vand.u32 2147483647, %v835
    %v843 = vand.u32 2147483647, %v837
    %v844 = vand.u32 2147483647, %v839
    %v845 = vsub.f32 0.0, %v841
    %v846 = vsub.f32 0.0, %v842
    %v847 = vsub.f32 0.0, %v843
    %v848 = vsub.f32 0.0, %v844
    %v849 = vmul.f32 %v845, 1.442695
    %v850 = vpow.pop %v849
    %v851 = vmul.f32 %v846, 1.442695
    %v852 = vpow.pop %v851
    %v853 = vmul.f32 %v847, 1.442695
    %v854 = vpow.pop %v853
    %v855 = vmul.f32 %v848, 1.442695
    %v856 = vpow.pop %v855
    %v857 = vadd.f32 %v850, 1.0
    %v858 = vadd.f32 %v852, 1.0
    %v859 = vadd.f32 %v854, 1.0
    %v860 = vadd.f32 %v856, 1.0
    %v861 = vrcp.pop %v857
    %v862 = vrcp.pop %v858
    %v863 = vrcp.pop %v859
    %v864 = vrcp.pop %v860
    %vm865 = vcmp.ge.f32.partialorder %v833, 0.0
    %vm866 = vcmp.ge.f32.partialorder %v835, 0.0
    %vm867 = vcmp.ge.f32.partialorder %v837, 0.0
    %vm868 = vcmp.ge.f32.partialorder %v839, 0.0
    %v869 = vmul.f32 %v850, %v861
    %v870 = vmul.f32 %v852, %v862
    %v871 = vmul.f32 %v854, %v863
    %v872 = vmul.f32 %v856, %v864
    %v873 = vsel %vm865, %v861, %v869
    %v874 = vsel %vm866, %v862, %v870
    %v875 = vsel %vm867, %v863, %v871
    %v876 = vsel %vm868, %v864, %v872
    %v877 = vmax.f32 %v833, 0.0
    %v878 = vmax.f32 %v835, 0.0
    %v879 = vmax.f32 %v837, 0.0
    %v880 = vmax.f32 %v839, 0.0
    %v881 = vadd.f32 %v850, 1.0
    %v882 = vlog2.pop %v881
    %v883 = vmul.f32 %v882, 0.6931472
    %v884 = vmul.f32 -0.5, %v850
    %v885 = vadd.f32 %v884, 1.0
    %v886 = vmul.f32 %v885, %v850
    %v887 = vand.u32 2147483647, %v850
    %vm888 = vcmp.lt.f32.partialorder %v887, 0.0004427343
    %v889 = vsel %vm888, %v886, %v883
    %v890 = vadd.f32 %v852, 1.0
    %v891 = vlog2.pop %v890
    %v892 = vmul.f32 %v891, 0.6931472
    %v893 = vmul.f32 -0.5, %v852
    %v894 = vadd.f32 %v893, 1.0
    %v895 = vmul.f32 %v894, %v852
    %v896 = vand.u32 2147483647, %v852
    %vm897 = vcmp.lt.f32.partialorder %v896, 0.0004427343
    %v898 = vsel %vm897, %v895, %v892
    %v899 = vadd.f32 %v854, 1.0
    %v900 = vlog2.pop %v899
    %v901 = vmul.f32 %v900, 0.6931472
    %v902 = vmul.f32 -0.5, %v854
    %v903 = vadd.f32 %v902, 1.0
    %v904 = vmul.f32 %v903, %v854
    %v905 = vand.u32 2147483647, %v854
    %vm906 = vcmp.lt.f32.partialorder %v905, 0.0004427343
    %v907 = vsel %vm906, %v904, %v901
    %v908 = vadd.f32 %v856, 1.0
    %v909 = vlog2.pop %v908
    %v910 = vmul.f32 %v909, 0.6931472
    %v911 = vmul.f32 -0.5, %v856
    %v912 = vadd.f32 %v911, 1.0
    %v913 = vmul.f32 %v912, %v856
    %v914 = vand.u32 2147483647, %v856
    %vm915 = vcmp.lt.f32.partialorder %v914, 0.0004427343
    %v916 = vsel %vm915, %v913, %v910
    %v917 = vadd.f32 %v877, %v889
    %v918 = vadd.f32 %v878, %v898
    %v919 = vadd.f32 %v879, %v907
    %v920 = vadd.f32 %v880, %v916
    %v921 = vmul.f32 %v106, %v833
    %v922 = vmul.f32 %v107, %v835
    %v923 = vmul.f32 %v108, %v837
    %v924 = vmul.f32 %v109, %v839
    %v925 = vsub.f32 %v917, %v921
    %v926 = vsub.f32 %v918, %v922
    %v927 = vsub.f32 %v919, %v923
    %v928 = vsub.f32 %v920, %v924
    %929 = vst [vmem:[#allocation11] sm:$0xff] %v620
    %930 = vst [vmem:[#allocation11 + $0x8] sm:$0xff] %v621
    %931 = vst [vmem:[#allocation12] sm:$0xff] %v626
    %932 = vst [vmem:[#allocation12 + $0x8] sm:$0xff] %v627
    %933 = vst [vmem:[#allocation14] sm:$0xff] %v687
    %934 = vst [vmem:[#allocation14 + $0x8] sm:$0xff] %v688
    %935 = vst [vmem:[#allocation15] sm:$0xff] %v638
    %936 = vst [vmem:[#allocation15 + $0x8] sm:$0xff] %v639
    %937 = vst [vmem:[#allocation17] sm:$0xff] %v650
    %938 = vst [vmem:[#allocation17 + $0x8] sm:$0xff] %v651
    %939 = vst [vmem:[#allocation18] sm:$0xff] %v873
    %940 = vst [vmem:[#allocation18 + $0x8] sm:$0xff] %v874
    %941 = vst [vmem:[#allocation18 + $0x10] sm:$0xff] %v875
    %942 = vst [vmem:[#allocation18 + $0x18] sm:$0xff] %v876
    %943 = vst [vmem:[#allocation20] sm:$0xff] %v925
    %944 = vst [vmem:[#allocation20 + $0x8] sm:$0xff] %v926
    %945 = vst [vmem:[#allocation20 + $0x10] sm:$0xff] %v927
    %946 = vst [vmem:[#allocation20 + $0x18] sm:$0xff] %v928
    // Predicated region
    $region50: #{tpu_custom_call.1} parent=1 // pred_check
      _
    $region51: #{tpu_custom_call.1} parent=1 // pred_check_branch
      %948 = sbr.rel (0) target = $region53
    $region52: #{tpu_custom_call.1} parent=1 // pred_region
      %s950 = ssub.s32 256, 256
      %951 = vsyncadd [#allocation4], %s950
      %s952 = sshll.u32 [#allocation11], 4
      %s953 = int_to_ptr.vmem [resolvable:$true] %s952
      %958 = dma.vmem_to_hbm [thread:$0]  %s953, 256, %s7, [#allocation4], 128, 128, 8
    $region53: #{tpu_custom_call.1} parent=1 // pred_fallthru
      _
    // Predicated region
    $region54: #{tpu_custom_call.1} parent=1 // pred_check
      _
    $region55: #{tpu_custom_call.1} parent=1 // pred_check_branch
      %960 = sbr.rel (0) target = $region57
    $region56: #{tpu_custom_call.1} parent=1 // pred_region
      %s962 = ssub.s32 256, 256
      %963 = vsyncadd [#allocation13], %s962
      %s964 = sshll.u32 [#allocation12], 4
      %s965 = int_to_ptr.vmem [resolvable:$true] %s964
      %970 = dma.vmem_to_hbm [thread:$0]  %s965, 256, %s8, [#allocation13], 128, 128, 8
    $region57: #{tpu_custom_call.1} parent=1 // pred_fallthru
      _
    // Predicated region
    $region58: #{tpu_custom_call.1} parent=1 // pred_check
      _
    $region59: #{tpu_custom_call.1} parent=1 // pred_check_branch
      %972 = sbr.rel (0) target = $region61
    $region60: #{tpu_custom_call.1} parent=1 // pred_region
      %s974 = ssub.s32 256, 256
      %975 = vsyncadd [#allocation13], %s974
      %s976 = sshll.u32 [#allocation14], 4
      %s977 = int_to_ptr.vmem [resolvable:$true] %s976
      %982 = dma.vmem_to_hbm [thread:$0]  %s977, 256, %s9, [#allocation13], 128, 128, 8
    $region61: #{tpu_custom_call.1} parent=1 // pred_fallthru
      _
    // Predicated region
    $region62: #{tpu_custom_call.1} parent=1 // pred_check
      _
    $region63: #{tpu_custom_call.1} parent=1 // pred_check_branch
      %984 = sbr.rel (0) target = $region65
    $region64: #{tpu_custom_call.1} parent=1 // pred_region
      %s986 = ssub.s32 256, 256
      %987 = vsyncadd [#allocation16], %s986
      %s988 = sshll.u32 [#allocation15], 4
      %s989 = int_to_ptr.vmem [resolvable:$true] %s988
      %994 = dma.vmem_to_hbm [thread:$0]  %s989, 256, %s10, [#allocation16], 128, 128, 8
    $region65: #{tpu_custom_call.1} parent=1 // pred_fallthru
      _
    // Predicated region
    $region66: #{tpu_custom_call.1} parent=1 // pred_check
      _
    $region67: #{tpu_custom_call.1} parent=1 // pred_check_branch
      %996 = sbr.rel (0) target = $region69
    $region68: #{tpu_custom_call.1} parent=1 // pred_region
      %s998 = ssub.s32 256, 256
      %999 = vsyncadd [#allocation16], %s998
      %s1000 = sshll.u32 [#allocation17], 4
      %s1001 = int_to_ptr.vmem [resolvable:$true] %s1000
      %1006 = dma.vmem_to_hbm [thread:$0]  %s1001, 256, %s11, [#allocation16], 128, 128, 8
    $region69: #{tpu_custom_call.1} parent=1 // pred_fallthru
      _
    // Predicated region
    $region70: #{tpu_custom_call.1} parent=1 // pred_check
      _
    $region71: #{tpu_custom_call.1} parent=1 // pred_check_branch
      %1008 = sbr.rel (0) target = $region73
    $region72: #{tpu_custom_call.1} parent=1 // pred_region
      %s1010 = ssub.s32 512, 512
      %1011 = vsyncadd [#allocation19], %s1010
      %s1012 = sshll.u32 [#allocation18], 4
      %s1013 = int_to_ptr.vmem [resolvable:$true] %s1012
      %1018 = dma.vmem_to_hbm [thread:$0]  %s1013, 512, %s12, [#allocation19], 256, 256, 16
    $region73: #{tpu_custom_call.1} parent=1 // pred_fallthru
      _
    // Predicated region
    $region74: #{tpu_custom_call.1} parent=1 // pred_check
      _
    $region75: #{tpu_custom_call.1} parent=1 // pred_check_branch
      %1020 = sbr.rel (0) target = $region77
    $region76: #{tpu_custom_call.1} parent=1 // pred_region
      %s1022 = ssub.s32 512, 512
      %1023 = vsyncadd [#allocation19], %s1022
      %s1024 = sshll.u32 [#allocation20], 4
      %s1025 = int_to_ptr.vmem [resolvable:$true] %s1024
      %1030 = dma.vmem_to_hbm [thread:$0]  %s1025, 512, %s13, [#allocation19], 256, 256, 16
    $region77: #{tpu_custom_call.1} parent=1 // pred_fallthru
      _
    // Predicated region
    $region78: #{tpu_custom_call.1} parent=1 // pred_check
      _
    $region79: #{tpu_custom_call.1} parent=1 // pred_check_branch
      %1032 = sbr.rel (0) target = $region81
    $region80: #{tpu_custom_call.1} parent=1 // pred_region
      %1033 = dma.done [#allocation4], 256
    $region81: #{tpu_custom_call.1} parent=1 // pred_fallthru
      _
    // Predicated region
    $region82: #{tpu_custom_call.1} parent=1 // pred_check
      _
    $region83: #{tpu_custom_call.1} parent=1 // pred_check_branch
      %1035 = sbr.rel (0) target = $region85
    $region84: #{tpu_custom_call.1} parent=1 // pred_region
      %1036 = dma.done [#allocation13], 256
    $region85: #{tpu_custom_call.1} parent=1 // pred_fallthru
      _
    // Predicated region
    $region86: #{tpu_custom_call.1} parent=1 // pred_check
      _
    $region87: #{tpu_custom_call.1} parent=1 // pred_check_branch
      %1038 = sbr.rel (0) target = $region89
    $region88: #{tpu_custom_call.1} parent=1 // pred_region
      %1039 = dma.done [#allocation13], 256
    $region89: #{tpu_custom_call.1} parent=1 // pred_fallthru
      _
    // Predicated region
    $region90: #{tpu_custom_call.1} parent=1 // pred_check
      _
    $region91: #{tpu_custom_call.1} parent=1 // pred_check_branch
      %1041 = sbr.rel (0) target = $region93
    $region92: #{tpu_custom_call.1} parent=1 // pred_region
      %1042 = dma.done [#allocation16], 256
    $region93: #{tpu_custom_call.1} parent=1 // pred_fallthru
      _
    // Predicated region
    $region94: #{tpu_custom_call.1} parent=1 // pred_check
      _
    $region95: #{tpu_custom_call.1} parent=1 // pred_check_branch
      %1044 = sbr.rel (0) target = $region97
    $region96: #{tpu_custom_call.1} parent=1 // pred_region
      %1045 = dma.done [#allocation16], 256
    $region97: #{tpu_custom_call.1} parent=1 // pred_fallthru
      _
    // Predicated region
    $region98: #{tpu_custom_call.1} parent=1 // pred_check
      _
    $region99: #{tpu_custom_call.1} parent=1 // pred_check_branch
      %1047 = sbr.rel (0) target = $region101
    $region100: #{tpu_custom_call.1} parent=1 // pred_region
      %1048 = dma.done [#allocation19], 512
    $region101: #{tpu_custom_call.1} parent=1 // pred_fallthru
      _
    // Predicated region
    $region102: #{tpu_custom_call.1} parent=1 // pred_check
      _
    $region103: #{tpu_custom_call.1} parent=1 // pred_check_branch
      %1050 = sbr.rel (0) target = $region105
    $region104: #{tpu_custom_call.1} parent=1 // pred_region
      %1051 = dma.done [#allocation19], 512
    $region105: #{tpu_custom_call.1} parent=1 // pred_fallthru
      _
    %1052 = vsyncpa [#allocation3], 1
    %1053 = vsyncpa [#allocation6], 1
    %1054 = vsyncpa [#allocation9], 1
    %1055 = vsyncpa [#allocation4], 1
    %1056 = vsyncpa [#allocation13], 1
    %1057 = vsyncpa [#allocation16], 1
    %1058 = vsyncpa [#allocation19], 1

</llo_original>
